<compile_context>
chip_gen: v7x
topology: tpu7x:2x2x1
jax: 0.10.0
libtpu: 0.0.40
codegen_flags: <defaults>
</compile_context>

<pallas_src>
import jax
import jax.numpy as jnp
from jax import lax
from jax.experimental import pallas as pl
from jax.experimental.pallas import tpu as pltpu

HIDDEN = 16


def _round_up(n, m):
    return ((n + m - 1) // m) * m


def _param_layout(n_class):
    """Row offsets of each parameter inside the packed (rows, cols) array.

    Every segment starts on a sublane (8-row) boundary so the in-kernel static
    slices never straddle an (8,128) tile boundary (no relayout copies)."""
    H = HIDDEN
    cols = max(4 * H, n_class)
    off_ih = 0                                   # w_ih  : (n_class, 4H)
    off_hh = off_ih + _round_up(n_class, 8)      # w_hh  : (H, 4H)
    off_b = off_hh + _round_up(H, 8)             # b_ih+b_hh : (1, 4H)
    off_wout = off_b + 8                         # w_out : (H, n_class)
    off_bout = off_wout + _round_up(H, 8)        # b_out : (1, n_class)
    rows = off_bout + 8
    return off_ih, off_hh, off_b, off_wout, off_bout, rows, cols


def pack_params(params, n_class):
    """Pack (w_ih, w_hh, b_gates, w_out, b_out) into ONE f32 array (once, at init).

    Collapses five tiny HBM->VMEM DMAs (fixed ~0.35 us descriptor cost each)
    into a single one for this latency-bound kernel."""
    w_ih, w_hh, b_gates, w_out, b_out = params
    off_ih, off_hh, off_b, off_wout, off_bout, rows, cols = _param_layout(n_class)
    p = jnp.zeros((rows, cols), jnp.float32)
    p = p.at[off_ih:off_ih + w_ih.shape[0], :w_ih.shape[1]].set(w_ih)
    p = p.at[off_hh:off_hh + w_hh.shape[0], :w_hh.shape[1]].set(w_hh)
    p = p.at[off_b:off_b + 1, :b_gates.shape[1]].set(b_gates)
    p = p.at[off_wout:off_wout + w_out.shape[0], :w_out.shape[1]].set(w_out)
    p = p.at[off_bout:off_bout + 1, :b_out.shape[1]].set(b_out)
    return p


def lstm_kernel(x_ref, p_ref, out_ref):
    # x_ref:   (seq*batch, n_class)  time-major rows: step t -> rows [t*batch, (t+1)*batch)
    # p_ref:   (rows, cols)          packed [w_ih; w_hh; b_gates; w_out; b_out]
    # out_ref: (batch, n_class)
    H = HIDDEN
    G = 4 * H
    batch, n_class = out_ref.shape
    seq = x_ref.shape[0] // batch
    off_ih, off_hh, off_b, off_wout, off_bout, _, _ = _param_layout(n_class)

    # --- Static, sublane-aligned slices of the single packed parameter array ---
    w_ih = p_ref[off_ih:off_ih + n_class, :G]        # (n_class, 4H)
    w_hh = p_ref[off_hh:off_hh + H, :G]              # (H, 4H)
    b_g = p_ref[off_b:off_b + 1, :G]                 # (1, 4H)  = b_ih + b_hh
    w_out = p_ref[off_wout:off_wout + H, :n_class]   # (H, n_class)
    b_out = p_ref[off_bout:off_bout + 1, :n_class]   # (1, n_class)

    # --- Hoisted input projection + combined bias: one MXU matmul, one add ---
    x_proj = (
        jnp.dot(x_ref[...], w_ih, preferred_element_type=jnp.float32) + b_g
    )  # (seq*batch, 4H)

    # --- Loop-invariant per-lane activation constants -------------------------
    # sigmoid(x) = 0.5*tanh(0.5*x) + 0.5 on the i/f/o lanes, plain tanh on the
    # g lanes  ->  a SINGLE full-width EUP pass activates all four gates.
    lane = lax.broadcasted_iota(jnp.int32, (1, G), 1)
    is_g = jnp.logical_and(lane >= 2 * H, lane < 3 * H)
    pre = jnp.where(is_g, 1.0, 0.5).astype(jnp.float32)    # pre- and post-scale
    offs = jnp.where(is_g, 0.0, 0.5).astype(jnp.float32)   # post-offset

    h = jnp.zeros((batch, H), jnp.float32)
    c = jnp.zeros((batch, H), jnp.float32)

    # --- Fully unrolled recurrence (static trip count, vreg-resident h/c) -----
    for t in range(seq):
        xp_t = x_proj[t * batch:(t + 1) * batch, :]   # (batch, 4H), static slice
        if t == 0:
            gates = xp_t                              # h0 == 0: skip the matmul
        else:
            # dot-first so the v7x MRB can fold the add into the accumulate
            gates = jnp.dot(h, w_hh, preferred_element_type=jnp.float32) + xp_t
        act = jnp.tanh(gates * pre) * pre + offs      # one EUP pass, cheap VPU
        i = act[:, 0 * H:1 * H]
        f = act[:, 1 * H:2 * H]
        g = act[:, 2 * H:3 * H]
        o = act[:, 3 * H:4 * H]
        c = f * c + i * g
        h = o * jnp.tanh(c)

    # --- Output projection: W(h_last) + b -------------------------------------
    out_ref[...] = (
        jnp.dot(h, w_out, preferred_element_type=jnp.float32) + b_out
    )


@jax.jit
def lstm_model_forward(x, packed_params):
    """x: (batch, seq, n_class) f32, packed_params: packed weights -> (batch, n_class)."""
    batch, seq, n_class = x.shape
    # Tiny time-major rearrangement; `allow_input_fusion` lets XLA fuse this
    # producer directly into the Pallas input (no standalone dispatch / HBM
    # round trip for 640 floats).
    x_flat = jnp.transpose(x, (1, 0, 2)).reshape(seq * batch, n_class)

    vmem = pl.BlockSpec(memory_space=pltpu.MemorySpace.VMEM)
    return pl.pallas_call(
        lstm_kernel,
        out_shape=jax.ShapeDtypeStruct((batch, n_class), jnp.float32),
        in_specs=[vmem, vmem],
        out_specs=vmem,
        compiler_params=pltpu.CompilerParams(
            allow_input_fusion=[True, False],   # fuse the transpose into input 0
        ),
    )(x_flat, packed_params)


def init_params(key, n_class):
    """Deterministic synthetic init matching torch.nn.LSTM / Linear shapes."""
    k1, k2, k3, k4, k5 = jax.random.split(key, 5)
    bound = 1.0 / jnp.sqrt(jnp.float32(HIDDEN))
    # torch weight_ih_l0: (4H, n_class) -> stored transposed (n_class, 4H)
    w_ih = jax.random.uniform(k1, (n_class, 4 * HIDDEN), jnp.float32, -bound, bound)
    # torch weight_hh_l0: (4H, H) -> stored transposed (H, 4H)
    w_hh = jax.random.uniform(k2, (HIDDEN, 4 * HIDDEN), jnp.float32, -bound, bound)
    # bias_ih_l0 + bias_hh_l0 combined, kept 2D for TPU layout
    b_ih = jax.random.uniform(k3, (4 * HIDDEN,), jnp.float32, -bound, bound)
    b_hh = jax.random.uniform(k4, (4 * HIDDEN,), jnp.float32, -bound, bound)
    b_gates = (b_ih + b_hh).reshape(1, 4 * HIDDEN)
    # self.W = Linear(16, n_class, bias=False): torch weight (n_class, 16) -> (16, n_class)
    w_out = jax.random.uniform(k5, (HIDDEN, n_class), jnp.float32, -bound, bound)
    # self.b = Parameter(torch.ones([n_class]))
    b_out = jnp.ones((1, n_class), jnp.float32)
    return w_ih, w_hh, b_gates, w_out, b_out


def reference_forward(x, params):
    """Pure-JAX reference (canonical torch.nn.LSTM math) for correctness."""
    w_ih, w_hh, b_gates, w_out, b_out = params
    batch, seq, n_class = x.shape
    x_t = jnp.transpose(x, (1, 0, 2))
    H = HIDDEN

    def step(carry, xt):
        h, c = carry
        gates = xt @ w_ih + h @ w_hh + b_gates
        i = jax.nn.sigmoid(gates[:, 0 * H:1 * H])
        f = jax.nn.sigmoid(gates[:, 1 * H:2 * H])
        g = jnp.tanh(gates[:, 2 * H:3 * H])
        o = jax.nn.sigmoid(gates[:, 3 * H:4 * H])
        c_new = f * c + i * g
        h_new = o * jnp.tanh(c_new)
        return (h_new, c_new), None

    (h_last, _), _ = lax.scan(
        step, (jnp.zeros((batch, H), jnp.float32), jnp.zeros((batch, H), jnp.float32)), x_t
    )
    return h_last @ w_out + b_out


if __name__ == "__main__":
    batch, seq, n_class = 2, 8, 10
    key = jax.random.PRNGKey(0)
    kx, kp = jax.random.split(key)
    x = jax.random.normal(kx, (batch, seq, n_class), jnp.float32)
    params = init_params(kp, n_class)
    packed = pack_params(params, n_class)   # one-time packing, outside the forward

    out = jax.block_until_ready(lstm_model_forward(x, packed))
    ref = jax.block_until_ready(reference_forward(x, params))

    assert out.shape == (batch, n_class)
    max_err = float(jnp.max(jnp.abs(out - ref)))
    # Tolerance covers the exact-math sigmoid(x) == 0.5*tanh(0.5x)+0.5 rewrite
    # (f32 rounding differences only).
    assert jnp.allclose(out, ref, atol=5e-5, rtol=5e-5), max_err
    print("KERNEL_OK")
</pallas_src>

<mosaic_0001>
module attributes {stable_mosaic.version = 11 : i64} {
  func.func @lstm_kernel(%arg0: memref<16x10xf32, #tpu.memory_space<vmem>>, %arg1: memref<64x64xf32, #tpu.memory_space<vmem>>, %arg2: memref<2x10xf32, #tpu.memory_space<vmem>>) attributes {dimension_semantics = [], scalar_prefetch = 0 : i64, scratch_operands = 0 : i64, tpu.core_type = #tpu.core_type<tc>} {
    %c0 = arith.constant 0 : index
    %c0_0 = arith.constant 0 : index
    %0 = vector.load %arg1[%c0, %c0_0] : memref<64x64xf32, #tpu.memory_space<vmem>>, vector<10x64xf32>
    %c16 = arith.constant 16 : index
    %c0_1 = arith.constant 0 : index
    %1 = vector.load %arg1[%c16, %c0_1] : memref<64x64xf32, #tpu.memory_space<vmem>>, vector<16x64xf32>
    %c32 = arith.constant 32 : index
    %c0_2 = arith.constant 0 : index
    %2 = vector.load %arg1[%c32, %c0_2] : memref<64x64xf32, #tpu.memory_space<vmem>>, vector<1x64xf32>
    %c40 = arith.constant 40 : index
    %c0_3 = arith.constant 0 : index
    %3 = vector.load %arg1[%c40, %c0_3] : memref<64x64xf32, #tpu.memory_space<vmem>>, vector<16x10xf32>
    %c56 = arith.constant 56 : index
    %c0_4 = arith.constant 0 : index
    %4 = vector.load %arg1[%c56, %c0_4] : memref<64x64xf32, #tpu.memory_space<vmem>>, vector<1x10xf32>
    %c0_5 = arith.constant 0 : index
    %c0_6 = arith.constant 0 : index
    %5 = vector.load %arg0[%c0_5, %c0_6] : memref<16x10xf32, #tpu.memory_space<vmem>>, vector<16x10xf32>
    %cst = arith.constant dense<0.000000e+00> : vector<16x64xf32>
    %6 = tpu.matmul %5, %0, %cst {dimension_numbers = #tpu.dot_dimension_numbers<[1], [0], [0], [1], [0, 0, 1, 1], [], []>} : vector<16x10xf32>, vector<10x64xf32>, vector<16x64xf32> -> vector<16x64xf32>
    %7 = vector.broadcast %2 : vector<1x64xf32> to vector<16x64xf32>
    %8 = arith.addf %6, %7 : vector<16x64xf32>
    %9 = tpu.iota {dimensions = array<i32: 1>} : vector<1x64xi32>
    %c32_i32 = arith.constant 32 : i32
    %10 = vector.broadcast %c32_i32 : i32 to vector<1x64xi32>
    %11 = arith.cmpi sge, %9, %10 : vector<1x64xi32>
    %c48_i32 = arith.constant 48 : i32
    %12 = vector.broadcast %c48_i32 : i32 to vector<1x64xi32>
    %13 = arith.cmpi slt, %9, %12 : vector<1x64xi32>
    %14 = arith.andi %11, %13 : vector<1x64xi1>
    %cst_7 = arith.constant 1.000000e+00 : f32
    %cst_8 = arith.constant 5.000000e-01 : f32
    %15 = vector.broadcast %cst_7 : f32 to vector<1x64xf32>
    %16 = vector.broadcast %cst_8 : f32 to vector<1x64xf32>
    %17 = arith.select %14, %15, %16 : vector<1x64xi1>, vector<1x64xf32>
    %cst_9 = arith.constant 0.000000e+00 : f32
    %cst_10 = arith.constant 5.000000e-01 : f32
    %18 = vector.broadcast %cst_9 : f32 to vector<1x64xf32>
    %19 = vector.broadcast %cst_10 : f32 to vector<1x64xf32>
    %20 = arith.select %14, %18, %19 : vector<1x64xi1>, vector<1x64xf32>
    %cst_11 = arith.constant 0.000000e+00 : f32
    %21 = vector.broadcast %cst_11 : f32 to vector<2x16xf32>
    %22 = vector.extract_strided_slice %8 {offsets = [0, 0], sizes = [2, 64], strides = [1, 1]} : vector<16x64xf32> to vector<2x64xf32>
    %23 = vector.broadcast %17 : vector<1x64xf32> to vector<2x64xf32>
    %24 = arith.mulf %22, %23 : vector<2x64xf32>
    %25 = math.tanh %24 : vector<2x64xf32>
    %26 = vector.broadcast %17 : vector<1x64xf32> to vector<2x64xf32>
    %27 = arith.mulf %25, %26 : vector<2x64xf32>
    %28 = vector.broadcast %20 : vector<1x64xf32> to vector<2x64xf32>
    %29 = arith.addf %27, %28 : vector<2x64xf32>
    %30 = vector.extract_strided_slice %29 {offsets = [0, 0], sizes = [2, 16], strides = [1, 1]} : vector<2x64xf32> to vector<2x16xf32>
    %31 = vector.extract_strided_slice %29 {offsets = [0, 16], sizes = [2, 16], strides = [1, 1]} : vector<2x64xf32> to vector<2x16xf32>
    %32 = vector.extract_strided_slice %29 {offsets = [0, 32], sizes = [2, 16], strides = [1, 1]} : vector<2x64xf32> to vector<2x16xf32>
    %33 = vector.extract_strided_slice %29 {offsets = [0, 48], sizes = [2, 16], strides = [1, 1]} : vector<2x64xf32> to vector<2x16xf32>
    %34 = arith.mulf %31, %21 : vector<2x16xf32>
    %35 = arith.mulf %30, %32 : vector<2x16xf32>
    %36 = arith.addf %34, %35 : vector<2x16xf32>
    %37 = math.tanh %36 : vector<2x16xf32>
    %38 = arith.mulf %33, %37 : vector<2x16xf32>
    %39 = vector.extract_strided_slice %8 {offsets = [2, 0], sizes = [2, 64], strides = [1, 1]} : vector<16x64xf32> to vector<2x64xf32>
    %cst_12 = arith.constant dense<0.000000e+00> : vector<2x64xf32>
    %40 = tpu.matmul %38, %1, %cst_12 {dimension_numbers = #tpu.dot_dimension_numbers<[1], [0], [0], [1], [0, 0, 1, 1], [], []>} : vector<2x16xf32>, vector<16x64xf32>, vector<2x64xf32> -> vector<2x64xf32>
    %41 = arith.addf %40, %39 : vector<2x64xf32>
    %42 = vector.broadcast %17 : vector<1x64xf32> to vector<2x64xf32>
    %43 = arith.mulf %41, %42 : vector<2x64xf32>
    %44 = math.tanh %43 : vector<2x64xf32>
    %45 = vector.broadcast %17 : vector<1x64xf32> to vector<2x64xf32>
    %46 = arith.mulf %44, %45 : vector<2x64xf32>
    %47 = vector.broadcast %20 : vector<1x64xf32> to vector<2x64xf32>
    %48 = arith.addf %46, %47 : vector<2x64xf32>
    %49 = vector.extract_strided_slice %48 {offsets = [0, 0], sizes = [2, 16], strides = [1, 1]} : vector<2x64xf32> to vector<2x16xf32>
    %50 = vector.extract_strided_slice %48 {offsets = [0, 16], sizes = [2, 16], strides = [1, 1]} : vector<2x64xf32> to vector<2x16xf32>
    %51 = vector.extract_strided_slice %48 {offsets = [0, 32], sizes = [2, 16], strides = [1, 1]} : vector<2x64xf32> to vector<2x16xf32>
    %52 = vector.extract_strided_slice %48 {offsets = [0, 48], sizes = [2, 16], strides = [1, 1]} : vector<2x64xf32> to vector<2x16xf32>
    %53 = arith.mulf %50, %36 : vector<2x16xf32>
    %54 = arith.mulf %49, %51 : vector<2x16xf32>
    %55 = arith.addf %53, %54 : vector<2x16xf32>
    %56 = math.tanh %55 : vector<2x16xf32>
    %57 = arith.mulf %52, %56 : vector<2x16xf32>
    %58 = vector.extract_strided_slice %8 {offsets = [4, 0], sizes = [2, 64], strides = [1, 1]} : vector<16x64xf32> to vector<2x64xf32>
    %cst_13 = arith.constant dense<0.000000e+00> : vector<2x64xf32>
    %59 = tpu.matmul %57, %1, %cst_13 {dimension_numbers = #tpu.dot_dimension_numbers<[1], [0], [0], [1], [0, 0, 1, 1], [], []>} : vector<2x16xf32>, vector<16x64xf32>, vector<2x64xf32> -> vector<2x64xf32>
    %60 = arith.addf %59, %58 : vector<2x64xf32>
    %61 = vector.broadcast %17 : vector<1x64xf32> to vector<2x64xf32>
    %62 = arith.mulf %60, %61 : vector<2x64xf32>
    %63 = math.tanh %62 : vector<2x64xf32>
    %64 = vector.broadcast %17 : vector<1x64xf32> to vector<2x64xf32>
    %65 = arith.mulf %63, %64 : vector<2x64xf32>
    %66 = vector.broadcast %20 : vector<1x64xf32> to vector<2x64xf32>
    %67 = arith.addf %65, %66 : vector<2x64xf32>
    %68 = vector.extract_strided_slice %67 {offsets = [0, 0], sizes = [2, 16], strides = [1, 1]} : vector<2x64xf32> to vector<2x16xf32>
    %69 = vector.extract_strided_slice %67 {offsets = [0, 16], sizes = [2, 16], strides = [1, 1]} : vector<2x64xf32> to vector<2x16xf32>
    %70 = vector.extract_strided_slice %67 {offsets = [0, 32], sizes = [2, 16], strides = [1, 1]} : vector<2x64xf32> to vector<2x16xf32>
    %71 = vector.extract_strided_slice %67 {offsets = [0, 48], sizes = [2, 16], strides = [1, 1]} : vector<2x64xf32> to vector<2x16xf32>
    %72 = arith.mulf %69, %55 : vector<2x16xf32>
    %73 = arith.mulf %68, %70 : vector<2x16xf32>
    %74 = arith.addf %72, %73 : vector<2x16xf32>
    %75 = math.tanh %74 : vector<2x16xf32>
    %76 = arith.mulf %71, %75 : vector<2x16xf32>
    %77 = vector.extract_strided_slice %8 {offsets = [6, 0], sizes = [2, 64], strides = [1, 1]} : vector<16x64xf32> to vector<2x64xf32>
    %cst_14 = arith.constant dense<0.000000e+00> : vector<2x64xf32>
    %78 = tpu.matmul %76, %1, %cst_14 {dimension_numbers = #tpu.dot_dimension_numbers<[1], [0], [0], [1], [0, 0, 1, 1], [], []>} : vector<2x16xf32>, vector<16x64xf32>, vector<2x64xf32> -> vector<2x64xf32>
    %79 = arith.addf %78, %77 : vector<2x64xf32>
    %80 = vector.broadcast %17 : vector<1x64xf32> to vector<2x64xf32>
    %81 = arith.mulf %79, %80 : vector<2x64xf32>
    %82 = math.tanh %81 : vector<2x64xf32>
    %83 = vector.broadcast %17 : vector<1x64xf32> to vector<2x64xf32>
    %84 = arith.mulf %82, %83 : vector<2x64xf32>
    %85 = vector.broadcast %20 : vector<1x64xf32> to vector<2x64xf32>
    %86 = arith.addf %84, %85 : vector<2x64xf32>
    %87 = vector.extract_strided_slice %86 {offsets = [0, 0], sizes = [2, 16], strides = [1, 1]} : vector<2x64xf32> to vector<2x16xf32>
    %88 = vector.extract_strided_slice %86 {offsets = [0, 16], sizes = [2, 16], strides = [1, 1]} : vector<2x64xf32> to vector<2x16xf32>
    %89 = vector.extract_strided_slice %86 {offsets = [0, 32], sizes = [2, 16], strides = [1, 1]} : vector<2x64xf32> to vector<2x16xf32>
    %90 = vector.extract_strided_slice %86 {offsets = [0, 48], sizes = [2, 16], strides = [1, 1]} : vector<2x64xf32> to vector<2x16xf32>
    %91 = arith.mulf %88, %74 : vector<2x16xf32>
    %92 = arith.mulf %87, %89 : vector<2x16xf32>
    %93 = arith.addf %91, %92 : vector<2x16xf32>
    %94 = math.tanh %93 : vector<2x16xf32>
    %95 = arith.mulf %90, %94 : vector<2x16xf32>
    %96 = vector.extract_strided_slice %8 {offsets = [8, 0], sizes = [2, 64], strides = [1, 1]} : vector<16x64xf32> to vector<2x64xf32>
    %cst_15 = arith.constant dense<0.000000e+00> : vector<2x64xf32>
    %97 = tpu.matmul %95, %1, %cst_15 {dimension_numbers = #tpu.dot_dimension_numbers<[1], [0], [0], [1], [0, 0, 1, 1], [], []>} : vector<2x16xf32>, vector<16x64xf32>, vector<2x64xf32> -> vector<2x64xf32>
    %98 = arith.addf %97, %96 : vector<2x64xf32>
    %99 = vector.broadcast %17 : vector<1x64xf32> to vector<2x64xf32>
    %100 = arith.mulf %98, %99 : vector<2x64xf32>
    %101 = math.tanh %100 : vector<2x64xf32>
    %102 = vector.broadcast %17 : vector<1x64xf32> to vector<2x64xf32>
    %103 = arith.mulf %101, %102 : vector<2x64xf32>
    %104 = vector.broadcast %20 : vector<1x64xf32> to vector<2x64xf32>
    %105 = arith.addf %103, %104 : vector<2x64xf32>
    %106 = vector.extract_strided_slice %105 {offsets = [0, 0], sizes = [2, 16], strides = [1, 1]} : vector<2x64xf32> to vector<2x16xf32>
    %107 = vector.extract_strided_slice %105 {offsets = [0, 16], sizes = [2, 16], strides = [1, 1]} : vector<2x64xf32> to vector<2x16xf32>
    %108 = vector.extract_strided_slice %105 {offsets = [0, 32], sizes = [2, 16], strides = [1, 1]} : vector<2x64xf32> to vector<2x16xf32>
    %109 = vector.extract_strided_slice %105 {offsets = [0, 48], sizes = [2, 16], strides = [1, 1]} : vector<2x64xf32> to vector<2x16xf32>
    %110 = arith.mulf %107, %93 : vector<2x16xf32>
    %111 = arith.mulf %106, %108 : vector<2x16xf32>
    %112 = arith.addf %110, %111 : vector<2x16xf32>
    %113 = math.tanh %112 : vector<2x16xf32>
    %114 = arith.mulf %109, %113 : vector<2x16xf32>
    %115 = vector.extract_strided_slice %8 {offsets = [10, 0], sizes = [2, 64], strides = [1, 1]} : vector<16x64xf32> to vector<2x64xf32>
    %cst_16 = arith.constant dense<0.000000e+00> : vector<2x64xf32>
    %116 = tpu.matmul %114, %1, %cst_16 {dimension_numbers = #tpu.dot_dimension_numbers<[1], [0], [0], [1], [0, 0, 1, 1], [], []>} : vector<2x16xf32>, vector<16x64xf32>, vector<2x64xf32> -> vector<2x64xf32>
    %117 = arith.addf %116, %115 : vector<2x64xf32>
    %118 = vector.broadcast %17 : vector<1x64xf32> to vector<2x64xf32>
    %119 = arith.mulf %117, %118 : vector<2x64xf32>
    %120 = math.tanh %119 : vector<2x64xf32>
    %121 = vector.broadcast %17 : vector<1x64xf32> to vector<2x64xf32>
    %122 = arith.mulf %120, %121 : vector<2x64xf32>
    %123 = vector.broadcast %20 : vector<1x64xf32> to vector<2x64xf32>
    %124 = arith.addf %122, %123 : vector<2x64xf32>
    %125 = vector.extract_strided_slice %124 {offsets = [0, 0], sizes = [2, 16], strides = [1, 1]} : vector<2x64xf32> to vector<2x16xf32>
    %126 = vector.extract_strided_slice %124 {offsets = [0, 16], sizes = [2, 16], strides = [1, 1]} : vector<2x64xf32> to vector<2x16xf32>
    %127 = vector.extract_strided_slice %124 {offsets = [0, 32], sizes = [2, 16], strides = [1, 1]} : vector<2x64xf32> to vector<2x16xf32>
    %128 = vector.extract_strided_slice %124 {offsets = [0, 48], sizes = [2, 16], strides = [1, 1]} : vector<2x64xf32> to vector<2x16xf32>
    %129 = arith.mulf %126, %112 : vector<2x16xf32>
    %130 = arith.mulf %125, %127 : vector<2x16xf32>
    %131 = arith.addf %129, %130 : vector<2x16xf32>
    %132 = math.tanh %131 : vector<2x16xf32>
    %133 = arith.mulf %128, %132 : vector<2x16xf32>
    %134 = vector.extract_strided_slice %8 {offsets = [12, 0], sizes = [2, 64], strides = [1, 1]} : vector<16x64xf32> to vector<2x64xf32>
    %cst_17 = arith.constant dense<0.000000e+00> : vector<2x64xf32>
    %135 = tpu.matmul %133, %1, %cst_17 {dimension_numbers = #tpu.dot_dimension_numbers<[1], [0], [0], [1], [0, 0, 1, 1], [], []>} : vector<2x16xf32>, vector<16x64xf32>, vector<2x64xf32> -> vector<2x64xf32>
    %136 = arith.addf %135, %134 : vector<2x64xf32>
    %137 = vector.broadcast %17 : vector<1x64xf32> to vector<2x64xf32>
    %138 = arith.mulf %136, %137 : vector<2x64xf32>
    %139 = math.tanh %138 : vector<2x64xf32>
    %140 = vector.broadcast %17 : vector<1x64xf32> to vector<2x64xf32>
    %141 = arith.mulf %139, %140 : vector<2x64xf32>
    %142 = vector.broadcast %20 : vector<1x64xf32> to vector<2x64xf32>
    %143 = arith.addf %141, %142 : vector<2x64xf32>
    %144 = vector.extract_strided_slice %143 {offsets = [0, 0], sizes = [2, 16], strides = [1, 1]} : vector<2x64xf32> to vector<2x16xf32>
    %145 = vector.extract_strided_slice %143 {offsets = [0, 16], sizes = [2, 16], strides = [1, 1]} : vector<2x64xf32> to vector<2x16xf32>
    %146 = vector.extract_strided_slice %143 {offsets = [0, 32], sizes = [2, 16], strides = [1, 1]} : vector<2x64xf32> to vector<2x16xf32>
    %147 = vector.extract_strided_slice %143 {offsets = [0, 48], sizes = [2, 16], strides = [1, 1]} : vector<2x64xf32> to vector<2x16xf32>
    %148 = arith.mulf %145, %131 : vector<2x16xf32>
    %149 = arith.mulf %144, %146 : vector<2x16xf32>
    %150 = arith.addf %148, %149 : vector<2x16xf32>
    %151 = math.tanh %150 : vector<2x16xf32>
    %152 = arith.mulf %147, %151 : vector<2x16xf32>
    %153 = vector.extract_strided_slice %8 {offsets = [14, 0], sizes = [2, 64], strides = [1, 1]} : vector<16x64xf32> to vector<2x64xf32>
    %cst_18 = arith.constant dense<0.000000e+00> : vector<2x64xf32>
    %154 = tpu.matmul %152, %1, %cst_18 {dimension_numbers = #tpu.dot_dimension_numbers<[1], [0], [0], [1], [0, 0, 1, 1], [], []>} : vector<2x16xf32>, vector<16x64xf32>, vector<2x64xf32> -> vector<2x64xf32>
    %155 = arith.addf %154, %153 : vector<2x64xf32>
    %156 = vector.broadcast %17 : vector<1x64xf32> to vector<2x64xf32>
    %157 = arith.mulf %155, %156 : vector<2x64xf32>
    %158 = math.tanh %157 : vector<2x64xf32>
    %159 = vector.broadcast %17 : vector<1x64xf32> to vector<2x64xf32>
    %160 = arith.mulf %158, %159 : vector<2x64xf32>
    %161 = vector.broadcast %20 : vector<1x64xf32> to vector<2x64xf32>
    %162 = arith.addf %160, %161 : vector<2x64xf32>
    %163 = vector.extract_strided_slice %162 {offsets = [0, 0], sizes = [2, 16], strides = [1, 1]} : vector<2x64xf32> to vector<2x16xf32>
    %164 = vector.extract_strided_slice %162 {offsets = [0, 16], sizes = [2, 16], strides = [1, 1]} : vector<2x64xf32> to vector<2x16xf32>
    %165 = vector.extract_strided_slice %162 {offsets = [0, 32], sizes = [2, 16], strides = [1, 1]} : vector<2x64xf32> to vector<2x16xf32>
    %166 = vector.extract_strided_slice %162 {offsets = [0, 48], sizes = [2, 16], strides = [1, 1]} : vector<2x64xf32> to vector<2x16xf32>
    %167 = arith.mulf %164, %150 : vector<2x16xf32>
    %168 = arith.mulf %163, %165 : vector<2x16xf32>
    %169 = arith.addf %167, %168 : vector<2x16xf32>
    %170 = math.tanh %169 : vector<2x16xf32>
    %171 = arith.mulf %166, %170 : vector<2x16xf32>
    %cst_19 = arith.constant dense<0.000000e+00> : vector<2x10xf32>
    %172 = tpu.matmul %171, %3, %cst_19 {dimension_numbers = #tpu.dot_dimension_numbers<[1], [0], [0], [1], [0, 0, 1, 1], [], []>} : vector<2x16xf32>, vector<16x10xf32>, vector<2x10xf32> -> vector<2x10xf32>
    %173 = vector.broadcast %4 : vector<1x10xf32> to vector<2x10xf32>
    %174 = arith.addf %172, %173 : vector<2x10xf32>
    %c0_20 = arith.constant 0 : index
    %c0_21 = arith.constant 0 : index
    %175 = vector.load %arg2[%c0_20, %c0_21] : memref<2x10xf32, #tpu.memory_space<vmem>>, vector<2x10xf32>
    tpu.vector_store %arg2[%c0_20, %c0_21], %174 {strides = array<i32>} : memref<2x10xf32, #tpu.memory_space<vmem>>, vector<2x10xf32>,
    return
  }
}

</mosaic_0001>

<llo_original>
// kernel: lstm_model_forward.1
$region0: #{lstm_model_forward.1}
  #allocation0 [shape = 'u32[]', space=smem, size = 0x4, offset = 0x4, fixed_abs, tag = 'smem constant byte address 0x4 - core index']
  #allocation1 [shape = 'u32[144,128]{1,0:T(1,128)}', space=vmem, size = 0x12000, scoped, tag = 'internal scratch']
  %s0 = inlined_call_operand.vmem [shape: f32[16,10], index: 0, kind: input, shape index: {}]
  %s1 = inlined_call_operand.hbm [shape: f32[64,64], index: 1, kind: input, shape index: {}]
  %s2 = inlined_call_operand.hbm [shape: f32[2,10], index: 2, kind: output, shape index: {}]
  %s3 = sld [smem:[#allocation0]]
  $region22: #{lstm_model_forward.1} parent=0
    _
  %s5 = ssub.s32 1, %s3
  %s6 = scalar_select 0, %s5, %s3
  $region1: #{lstm_model_forward.1} parent=0
    #allocation2 [shape = 'u8[32768]{0}', space=vmem, size = 0x8000, scoped, tag = 'input window, operand 1, single buffered']
    #allocation3 [shape = 's32[1]{0}', space=sflag, size = 0x4, scoped, tag = 'scoped memory for lstm_model_forward.1']
    #allocation4 [shape = 's32[1]{0}', space=sflag, size = 0x4, scoped, tag = 'scoped memory for lstm_model_forward.1']
    #allocation5 [shape = 'u8[1024]{0}', space=vmem, size = 0x400, scoped, tag = 'output window, operand 0, single buffered']
    %7 = vsyncpa [#allocation3], 0
    %8 = vsyncpa [#allocation4], 0
    // Predicated region
    $region2: #{lstm_model_forward.1} parent=1 // pred_check
      _
    $region3: #{lstm_model_forward.1} parent=1 // pred_check_branch
      %10 = sbr.rel (0) target = $region5
    $region4: #{lstm_model_forward.1} parent=1 // pred_region
      _
    $region5: #{lstm_model_forward.1} parent=1 // pred_fallthru
      _
    // Predicated region
    $region6: #{lstm_model_forward.1} parent=1 // pred_check
      _
    $region7: #{lstm_model_forward.1} parent=1 // pred_check_branch
      %12 = sbr.rel (0) target = $region9
    $region8: #{lstm_model_forward.1} parent=1 // pred_region
      %s14 = ssub.s32 1024, 1024
      %15 = vsyncadd [#allocation3], %s14
      %s16 = sshll.u32 [#allocation2], 4
      %s17 = int_to_ptr.vmem [resolvable:$true] %s16
      %22 = dma.hbm_to_vmem [thread:$0]  %s1, 1024, %s17, [#allocation3], 128, 128, 8
    $region9: #{lstm_model_forward.1} parent=1 // pred_fallthru
      _
    // Predicated region
    $region10: #{lstm_model_forward.1} parent=1 // pred_check
      _
    $region11: #{lstm_model_forward.1} parent=1 // pred_check_branch
      %24 = sbr.rel (0) target = $region13
    $region12: #{lstm_model_forward.1} parent=1 // pred_region
      %25 = dma.done [#allocation3], 1024
    $region13: #{lstm_model_forward.1} parent=1 // pred_fallthru
      _
    %v26 = vld [vmem:[#allocation2] sm:$0xff]
    %v27 = vld [vmem:[#allocation2 + $0x8] sm:$0x3]
    %v28 = vld [vmem:[#allocation2 + $0x10] sm:$0xff]
    %v29 = vld [vmem:[#allocation2 + $0x18] sm:$0xff]
    %v30 = vld [vmem:[#allocation2 + $0x20] sm:$0x1]
    %v31 = vld [vmem:[#allocation2 + $0x28] sm:$0xff]
    %v32 = vld [vmem:[#allocation2 + $0x30] sm:$0xff]
    %v33 = vld [vmem:[#allocation2 + $0x38] sm:$0x1]
    %v34 = vld [vmem:[%s0] sm:$0xff]
    %v35 = vld [vmem:[%s0 + $0x8] sm:$0xff]
    %v36 = vlaneseq
    %v37 = vshrl.u32 %v36, 7
    %v38 = vsub.s32 0, %v37
    %v39 = vrot.slane %v30, %v38
    %vm40 = vcmask 80896
    %v42 = vsel %vm40, %v34, 0
    %v45 = vsel %vm40, %v35, 0
    %vm47 = vcmask 1041408
    %v49 = vsel %vm47, %v27, 0
    %51 = vmatprep.subr.mxu0 0.0
    %52 = vmatpush1.msra.mxu0 %v26
    %53 = vmatprep.subr.mxu0 0.0
    %54 = vmatpush1.msra.mxu0 %v49
    %55 = vmatprep.subr.mxu0 0.0
    %56 = vmatpush1.msra.mxu0 0.0
    %57 = vmatprep.subr.mxu0 0.0
    %58 = vmatpush1.msra.mxu0 0.0
    %59 = vmatprep.subr.mxu0 0.0
    %60 = vmatpush1.msra.mxu0 0.0
    %61 = vmatprep.subr.mxu0 0.0
    %62 = vmatpush1.msra.mxu0 0.0
    %63 = vmatprep.subr.mxu0 0.0
    %64 = vmatpush1.msra.mxu0 0.0
    %65 = vmatprep.subr.mxu0 0.0
    %66 = vmatpush1.msra.mxu0 0.0
    %67 = vmatprep.subr.mxu0 0.0
    %68 = vmatpush1.msra.mxu0 0.0
    %69 = vmatprep.subr.mxu0 0.0
    %70 = vmatpush1.msra.mxu0 0.0
    %71 = vmatprep.subr.mxu0 0.0
    %72 = vmatpush1.msra.mxu0 0.0
    %73 = vmatprep.subr.mxu0 0.0
    %74 = vmatpush1.msra.mxu0 0.0
    %75 = vmatprep.subr.mxu0 0.0
    %76 = vmatpush1.msra.mxu0 0.0
    %77 = vmatprep.subr.mxu0 0.0
    %78 = vmatpush1.msra.mxu0 0.0
    %79 = vmatprep.subr.mxu0 0.0
    %80 = vmatpush1.msra.mxu0 0.0
    %81 = vmatprep.subr.mxu0 0.0
    %82 = vmatpush1.msra.mxu0 0.0
    %83 = vmatprep.subr.mxu0 0.0
    %84 = vmatpush1.msra.mxu0 0.0
    %85 = vmatprep.subr.mxu0 0.0
    %86 = vmatpush1.msra.mxu0 0.0
    %87 = vmatprep.subr.mxu0 0.0
    %88 = vmatpush1.msra.mxu0 0.0
    %89 = vmatprep.subr.mxu0 0.0
    %90 = vmatpush1.msra.mxu0 0.0
    %91 = vmatprep.subr.mxu0 0.0
    %92 = vmatpush1.msra.mxu0 0.0
    %93 = vmatprep.subr.mxu0 0.0
    %94 = vmatpush1.msra.mxu0 0.0
    %95 = vmatprep.subr.mxu0 0.0
    %96 = vmatpush1.msra.mxu0 0.0
    %97 = vmatprep.subr.mxu0 0.0
    %98 = vmatpush1.msra.mxu0 0.0
    %99 = vmatprep.subr.mxu0 0.0
    %100 = vmatpush1.msra.mxu0 0.0
    %101 = vmatprep.subr.mxu0 0.0
    %102 = vmatpush1.msra.mxu0 0.0
    %103 = vmatprep.subr.mxu0 0.0
    %104 = vmatpush1.msra.mxu0 0.0
    %105 = vmatprep.subr.mxu0 0.0
    %106 = vmatpush1.msra.mxu0 0.0
    %107 = vmatprep.subr.mxu0 0.0
    %108 = vmatpush1.msra.mxu0 0.0
    %109 = vmatprep.subr.mxu0 0.0
    %110 = vmatpush1.msra.mxu0 0.0
    %111 = vmatprep.subr.mxu0 0.0
    %112 = vmatpush1.msra.mxu0 0.0
    %113 = vmatprep.subr.mxu0 0.0
    %114 = vmatpush1.msra.mxu0 0.0
    %115 = vmatprep.mubr.f32.mxu0 0.0
    %116 = vmatmul.mubr.f32.gmra.mrb[0].mxu0 %v42
    %v117 = vpop.f32.mrb[0].mxu0
    %v118 = vadd.f32 %v39, %v117
    %v119 = vpop.f32.mrb[0].mxu0
    %120 = vmatprep.mubr.f32.mxu0 0.0
    %121 = vmatmul.mubr.f32.gmra.mrb[0].mxu0 %v45
    %v122 = vpop.f32.mrb[0].mxu0
    %v123 = vadd.f32 %v39, %v122
    %v124 = vpop.f32.mrb[0].mxu0
    %125 = vdwg.mxu0
    %v126 = vlaneseq
    %v127 = vand.u32 %v126, 127
    %vm128 = vcmp.ge.s32.totalorder %v127, 32
    %vm129 = vcmp.lt.s32.totalorder %v127, 48
    %vm130 = vmand %vm128, %vm129
    %v131 = vsel %vm130, 1.0, 0.5
    %v132 = vsel %vm130, 0.0, 0.5
    %v133 = vmul.f32 %v118, %v131
    %v134 = vtanh.pop %v133
    %v135 = vmul.f32 %v134, %v131
    %v136 = vadd.f32 %v135, %v132
    %v137 = vmul.f32 %v136, 0.0
    %139 = vrot.lane.b32.xlu0 %v136, 96
    %v140 = vpop.permute.xlu0 %139
    %v142 = vmul.f32 %v136, %v140
    %144 = vrot.lane.b32.xlu0 %v142, 16
    %v145 = vpop.permute.xlu0 %144
    %v147 = vadd.f32 %v137, %v145
    %v148 = vtanh.pop %v147
    %150 = vrot.lane.b32.xlu0 %v148, 32
    %v151 = vpop.permute.xlu0 %150
    %v153 = vmul.f32 %v136, %v151
    %155 = vrot.lane.b32.xlu0 %v153, 80
    %v156 = vpop.permute.xlu0 %155
    %v158 = vrot.slane %v118, 2
    %vm160 = vcmask 130048
    %v161 = vsel %vm160, %v156, 0
    %163 = vmatprep.subr.mxu0 0.0
    %164 = vmatpush1.msra.mxu0 %v28
    %165 = vmatprep.subr.mxu0 0.0
    %166 = vmatpush1.msra.mxu0 %v29
    %167 = vmatprep.subr.mxu0 0.0
    %168 = vmatpush1.msra.mxu0 0.0
    %169 = vmatprep.subr.mxu0 0.0
    %170 = vmatpush1.msra.mxu0 0.0
    %171 = vmatprep.subr.mxu0 0.0
    %172 = vmatpush1.msra.mxu0 0.0
    %173 = vmatprep.subr.mxu0 0.0
    %174 = vmatpush1.msra.mxu0 0.0
    %175 = vmatprep.subr.mxu0 0.0
    %176 = vmatpush1.msra.mxu0 0.0
    %177 = vmatprep.subr.mxu0 0.0
    %178 = vmatpush1.msra.mxu0 0.0
    %179 = vmatprep.subr.mxu0 0.0
    %180 = vmatpush1.msra.mxu0 0.0
    %181 = vmatprep.subr.mxu0 0.0
    %182 = vmatpush1.msra.mxu0 0.0
    %183 = vmatprep.subr.mxu0 0.0
    %184 = vmatpush1.msra.mxu0 0.0
    %185 = vmatprep.subr.mxu0 0.0
    %186 = vmatpush1.msra.mxu0 0.0
    %187 = vmatprep.subr.mxu0 0.0
    %188 = vmatpush1.msra.mxu0 0.0
    %189 = vmatprep.subr.mxu0 0.0
    %190 = vmatpush1.msra.mxu0 0.0
    %191 = vmatprep.subr.mxu0 0.0
    %192 = vmatpush1.msra.mxu0 0.0
    %193 = vmatprep.subr.mxu0 0.0
    %194 = vmatpush1.msra.mxu0 0.0
    %195 = vmatprep.subr.mxu0 0.0
    %196 = vmatpush1.msra.mxu0 0.0
    %197 = vmatprep.subr.mxu0 0.0
    %198 = vmatpush1.msra.mxu0 0.0
    %199 = vmatprep.subr.mxu0 0.0
    %200 = vmatpush1.msra.mxu0 0.0
    %201 = vmatprep.subr.mxu0 0.0
    %202 = vmatpush1.msra.mxu0 0.0
    %203 = vmatprep.subr.mxu0 0.0
    %204 = vmatpush1.msra.mxu0 0.0
    %205 = vmatprep.subr.mxu0 0.0
    %206 = vmatpush1.msra.mxu0 0.0
    %207 = vmatprep.subr.mxu0 0.0
    %208 = vmatpush1.msra.mxu0 0.0
    %209 = vmatprep.subr.mxu0 0.0
    %210 = vmatpush1.msra.mxu0 0.0
    %211 = vmatprep.subr.mxu0 0.0
    %212 = vmatpush1.msra.mxu0 0.0
    %213 = vmatprep.subr.mxu0 0.0
    %214 = vmatpush1.msra.mxu0 0.0
    %215 = vmatprep.subr.mxu0 0.0
    %216 = vmatpush1.msra.mxu0 0.0
    %217 = vmatprep.subr.mxu0 0.0
    %218 = vmatpush1.msra.mxu0 0.0
    %219 = vmatprep.subr.mxu0 0.0
    %220 = vmatpush1.msra.mxu0 0.0
    %221 = vmatprep.subr.mxu0 0.0
    %222 = vmatpush1.msra.mxu0 0.0
    %223 = vmatprep.subr.mxu0 0.0
    %224 = vmatpush1.msra.mxu0 0.0
    %225 = vmatprep.subr.mxu0 0.0
    %226 = vmatpush1.msra.mxu0 0.0
    %227 = vmatprep.mubr.f32.mxu0 0.0
    %228 = vmatmul.mubr.f32.gmra.mrb[0].mxu0 %v161
    %v229 = vpop.f32.mrb[0].mxu0
    %v230 = vadd.f32 %v158, %v229
    %v231 = vpop.f32.mrb[0].mxu0
    %232 = vdwg.mxu0
    %v233 = vmul.f32 %v230, %v131
    %v234 = vtanh.pop %v233
    %v235 = vmul.f32 %v234, %v131
    %v236 = vadd.f32 %v235, %v132
    %v237 = vmul.f32 %v236, %v147
    %239 = vrot.lane.b32.xlu0 %v236, 96
    %v240 = vpop.permute.xlu0 %239
    %v242 = vmul.f32 %v236, %v240
    %244 = vrot.lane.b32.xlu0 %v242, 16
    %v245 = vpop.permute.xlu0 %244
    %v247 = vadd.f32 %v237, %v245
    %v248 = vtanh.pop %v247
    %250 = vrot.lane.b32.xlu0 %v248, 32
    %v251 = vpop.permute.xlu0 %250
    %v253 = vmul.f32 %v236, %v251
    %255 = vrot.lane.b32.xlu0 %v253, 80
    %v256 = vpop.permute.xlu0 %255
    %v257 = vrot.slane %v118, 4
    %v259 = vsel %vm160, %v256, 0
    %261 = vmatprep.subr.mxu0 0.0
    %262 = vmatpush1.msra.mxu0 %v28
    %263 = vmatprep.subr.mxu0 0.0
    %264 = vmatpush1.msra.mxu0 %v29
    %265 = vmatprep.subr.mxu0 0.0
    %266 = vmatpush1.msra.mxu0 0.0
    %267 = vmatprep.subr.mxu0 0.0
    %268 = vmatpush1.msra.mxu0 0.0
    %269 = vmatprep.subr.mxu0 0.0
    %270 = vmatpush1.msra.mxu0 0.0
    %271 = vmatprep.subr.mxu0 0.0
    %272 = vmatpush1.msra.mxu0 0.0
    %273 = vmatprep.subr.mxu0 0.0
    %274 = vmatpush1.msra.mxu0 0.0
    %275 = vmatprep.subr.mxu0 0.0
    %276 = vmatpush1.msra.mxu0 0.0
    %277 = vmatprep.subr.mxu0 0.0
    %278 = vmatpush1.msra.mxu0 0.0
    %279 = vmatprep.subr.mxu0 0.0
    %280 = vmatpush1.msra.mxu0 0.0
    %281 = vmatprep.subr.mxu0 0.0
    %282 = vmatpush1.msra.mxu0 0.0
    %283 = vmatprep.subr.mxu0 0.0
    %284 = vmatpush1.msra.mxu0 0.0
    %285 = vmatprep.subr.mxu0 0.0
    %286 = vmatpush1.msra.mxu0 0.0
    %287 = vmatprep.subr.mxu0 0.0
    %288 = vmatpush1.msra.mxu0 0.0
    %289 = vmatprep.subr.mxu0 0.0
    %290 = vmatpush1.msra.mxu0 0.0
    %291 = vmatprep.subr.mxu0 0.0
    %292 = vmatpush1.msra.mxu0 0.0
    %293 = vmatprep.subr.mxu0 0.0
    %294 = vmatpush1.msra.mxu0 0.0
    %295 = vmatprep.subr.mxu0 0.0
    %296 = vmatpush1.msra.mxu0 0.0
    %297 = vmatprep.subr.mxu0 0.0
    %298 = vmatpush1.msra.mxu0 0.0
    %299 = vmatprep.subr.mxu0 0.0
    %300 = vmatpush1.msra.mxu0 0.0
    %301 = vmatprep.subr.mxu0 0.0
    %302 = vmatpush1.msra.mxu0 0.0
    %303 = vmatprep.subr.mxu0 0.0
    %304 = vmatpush1.msra.mxu0 0.0
    %305 = vmatprep.subr.mxu0 0.0
    %306 = vmatpush1.msra.mxu0 0.0
    %307 = vmatprep.subr.mxu0 0.0
    %308 = vmatpush1.msra.mxu0 0.0
    %309 = vmatprep.subr.mxu0 0.0
    %310 = vmatpush1.msra.mxu0 0.0
    %311 = vmatprep.subr.mxu0 0.0
    %312 = vmatpush1.msra.mxu0 0.0
    %313 = vmatprep.subr.mxu0 0.0
    %314 = vmatpush1.msra.mxu0 0.0
    %315 = vmatprep.subr.mxu0 0.0
    %316 = vmatpush1.msra.mxu0 0.0
    %317 = vmatprep.subr.mxu0 0.0
    %318 = vmatpush1.msra.mxu0 0.0
    %319 = vmatprep.subr.mxu0 0.0
    %320 = vmatpush1.msra.mxu0 0.0
    %321 = vmatprep.subr.mxu0 0.0
    %322 = vmatpush1.msra.mxu0 0.0
    %323 = vmatprep.subr.mxu0 0.0
    %324 = vmatpush1.msra.mxu0 0.0
    %325 = vmatprep.mubr.f32.mxu0 0.0
    %326 = vmatmul.mubr.f32.gmra.mrb[0].mxu0 %v259
    %v327 = vpop.f32.mrb[0].mxu0
    %v328 = vadd.f32 %v257, %v327
    %v329 = vpop.f32.mrb[0].mxu0
    %330 = vdwg.mxu0
    %v331 = vmul.f32 %v328, %v131
    %v332 = vtanh.pop %v331
    %v333 = vmul.f32 %v332, %v131
    %v334 = vadd.f32 %v333, %v132
    %v335 = vmul.f32 %v334, %v247
    %337 = vrot.lane.b32.xlu0 %v334, 96
    %v338 = vpop.permute.xlu0 %337
    %v340 = vmul.f32 %v334, %v338
    %342 = vrot.lane.b32.xlu0 %v340, 16
    %v343 = vpop.permute.xlu0 %342
    %v345 = vadd.f32 %v335, %v343
    %v346 = vtanh.pop %v345
    %348 = vrot.lane.b32.xlu0 %v346, 32
    %v349 = vpop.permute.xlu0 %348
    %v351 = vmul.f32 %v334, %v349
    %353 = vrot.lane.b32.xlu0 %v351, 80
    %v354 = vpop.permute.xlu0 %353
    %v355 = vrot.slane %v118, 6
    %v357 = vsel %vm160, %v354, 0
    %359 = vmatprep.subr.mxu0 0.0
    %360 = vmatpush1.msra.mxu0 %v28
    %361 = vmatprep.subr.mxu0 0.0
    %362 = vmatpush1.msra.mxu0 %v29
    %363 = vmatprep.subr.mxu0 0.0
    %364 = vmatpush1.msra.mxu0 0.0
    %365 = vmatprep.subr.mxu0 0.0
    %366 = vmatpush1.msra.mxu0 0.0
    %367 = vmatprep.subr.mxu0 0.0
    %368 = vmatpush1.msra.mxu0 0.0
    %369 = vmatprep.subr.mxu0 0.0
    %370 = vmatpush1.msra.mxu0 0.0
    %371 = vmatprep.subr.mxu0 0.0
    %372 = vmatpush1.msra.mxu0 0.0
    %373 = vmatprep.subr.mxu0 0.0
    %374 = vmatpush1.msra.mxu0 0.0
    %375 = vmatprep.subr.mxu0 0.0
    %376 = vmatpush1.msra.mxu0 0.0
    %377 = vmatprep.subr.mxu0 0.0
    %378 = vmatpush1.msra.mxu0 0.0
    %379 = vmatprep.subr.mxu0 0.0
    %380 = vmatpush1.msra.mxu0 0.0
    %381 = vmatprep.subr.mxu0 0.0
    %382 = vmatpush1.msra.mxu0 0.0
    %383 = vmatprep.subr.mxu0 0.0
    %384 = vmatpush1.msra.mxu0 0.0
    %385 = vmatprep.subr.mxu0 0.0
    %386 = vmatpush1.msra.mxu0 0.0
    %387 = vmatprep.subr.mxu0 0.0
    %388 = vmatpush1.msra.mxu0 0.0
    %389 = vmatprep.subr.mxu0 0.0
    %390 = vmatpush1.msra.mxu0 0.0
    %391 = vmatprep.subr.mxu0 0.0
    %392 = vmatpush1.msra.mxu0 0.0
    %393 = vmatprep.subr.mxu0 0.0
    %394 = vmatpush1.msra.mxu0 0.0
    %395 = vmatprep.subr.mxu0 0.0
    %396 = vmatpush1.msra.mxu0 0.0
    %397 = vmatprep.subr.mxu0 0.0
    %398 = vmatpush1.msra.mxu0 0.0
    %399 = vmatprep.subr.mxu0 0.0
    %400 = vmatpush1.msra.mxu0 0.0
    %401 = vmatprep.subr.mxu0 0.0
    %402 = vmatpush1.msra.mxu0 0.0
    %403 = vmatprep.subr.mxu0 0.0
    %404 = vmatpush1.msra.mxu0 0.0
    %405 = vmatprep.subr.mxu0 0.0
    %406 = vmatpush1.msra.mxu0 0.0
    %407 = vmatprep.subr.mxu0 0.0
    %408 = vmatpush1.msra.mxu0 0.0
    %409 = vmatprep.subr.mxu0 0.0
    %410 = vmatpush1.msra.mxu0 0.0
    %411 = vmatprep.subr.mxu0 0.0
    %412 = vmatpush1.msra.mxu0 0.0
    %413 = vmatprep.subr.mxu0 0.0
    %414 = vmatpush1.msra.mxu0 0.0
    %415 = vmatprep.subr.mxu0 0.0
    %416 = vmatpush1.msra.mxu0 0.0
    %417 = vmatprep.subr.mxu0 0.0
    %418 = vmatpush1.msra.mxu0 0.0
    %419 = vmatprep.subr.mxu0 0.0
    %420 = vmatpush1.msra.mxu0 0.0
    %421 = vmatprep.subr.mxu0 0.0
    %422 = vmatpush1.msra.mxu0 0.0
    %423 = vmatprep.mubr.f32.mxu0 0.0
    %424 = vmatmul.mubr.f32.gmra.mrb[0].mxu0 %v357
    %v425 = vpop.f32.mrb[0].mxu0
    %v426 = vadd.f32 %v355, %v425
    %v427 = vpop.f32.mrb[0].mxu0
    %428 = vdwg.mxu0
    %v429 = vmul.f32 %v426, %v131
    %v430 = vtanh.pop %v429
    %v431 = vmul.f32 %v430, %v131
    %v432 = vadd.f32 %v431, %v132
    %v433 = vmul.f32 %v432, %v345
    %435 = vrot.lane.b32.xlu0 %v432, 96
    %v436 = vpop.permute.xlu0 %435
    %v438 = vmul.f32 %v432, %v436
    %440 = vrot.lane.b32.xlu0 %v438, 16
    %v441 = vpop.permute.xlu0 %440
    %v443 = vadd.f32 %v433, %v441
    %v444 = vtanh.pop %v443
    %446 = vrot.lane.b32.xlu0 %v444, 32
    %v447 = vpop.permute.xlu0 %446
    %v449 = vmul.f32 %v432, %v447
    %451 = vrot.lane.b32.xlu0 %v449, 80
    %v452 = vpop.permute.xlu0 %451
    %v453 = vsel %vm160, %v452, 0
    %455 = vmatprep.subr.mxu0 0.0
    %456 = vmatpush1.msra.mxu0 %v28
    %457 = vmatprep.subr.mxu0 0.0
    %458 = vmatpush1.msra.mxu0 %v29
    %459 = vmatprep.subr.mxu0 0.0
    %460 = vmatpush1.msra.mxu0 0.0
    %461 = vmatprep.subr.mxu0 0.0
    %462 = vmatpush1.msra.mxu0 0.0
    %463 = vmatprep.subr.mxu0 0.0
    %464 = vmatpush1.msra.mxu0 0.0
    %465 = vmatprep.subr.mxu0 0.0
    %466 = vmatpush1.msra.mxu0 0.0
    %467 = vmatprep.subr.mxu0 0.0
    %468 = vmatpush1.msra.mxu0 0.0
    %469 = vmatprep.subr.mxu0 0.0
    %470 = vmatpush1.msra.mxu0 0.0
    %471 = vmatprep.subr.mxu0 0.0
    %472 = vmatpush1.msra.mxu0 0.0
    %473 = vmatprep.subr.mxu0 0.0
    %474 = vmatpush1.msra.mxu0 0.0
    %475 = vmatprep.subr.mxu0 0.0
    %476 = vmatpush1.msra.mxu0 0.0
    %477 = vmatprep.subr.mxu0 0.0
    %478 = vmatpush1.msra.mxu0 0.0
    %479 = vmatprep.subr.mxu0 0.0
    %480 = vmatpush1.msra.mxu0 0.0
    %481 = vmatprep.subr.mxu0 0.0
    %482 = vmatpush1.msra.mxu0 0.0
    %483 = vmatprep.subr.mxu0 0.0
    %484 = vmatpush1.msra.mxu0 0.0
    %485 = vmatprep.subr.mxu0 0.0
    %486 = vmatpush1.msra.mxu0 0.0
    %487 = vmatprep.subr.mxu0 0.0
    %488 = vmatpush1.msra.mxu0 0.0
    %489 = vmatprep.subr.mxu0 0.0
    %490 = vmatpush1.msra.mxu0 0.0
    %491 = vmatprep.subr.mxu0 0.0
    %492 = vmatpush1.msra.mxu0 0.0
    %493 = vmatprep.subr.mxu0 0.0
    %494 = vmatpush1.msra.mxu0 0.0
    %495 = vmatprep.subr.mxu0 0.0
    %496 = vmatpush1.msra.mxu0 0.0
    %497 = vmatprep.subr.mxu0 0.0
    %498 = vmatpush1.msra.mxu0 0.0
    %499 = vmatprep.subr.mxu0 0.0
    %500 = vmatpush1.msra.mxu0 0.0
    %501 = vmatprep.subr.mxu0 0.0
    %502 = vmatpush1.msra.mxu0 0.0
    %503 = vmatprep.subr.mxu0 0.0
    %504 = vmatpush1.msra.mxu0 0.0
    %505 = vmatprep.subr.mxu0 0.0
    %506 = vmatpush1.msra.mxu0 0.0
    %507 = vmatprep.subr.mxu0 0.0
    %508 = vmatpush1.msra.mxu0 0.0
    %509 = vmatprep.subr.mxu0 0.0
    %510 = vmatpush1.msra.mxu0 0.0
    %511 = vmatprep.subr.mxu0 0.0
    %512 = vmatpush1.msra.mxu0 0.0
    %513 = vmatprep.subr.mxu0 0.0
    %514 = vmatpush1.msra.mxu0 0.0
    %515 = vmatprep.subr.mxu0 0.0
    %516 = vmatpush1.msra.mxu0 0.0
    %517 = vmatprep.subr.mxu0 0.0
    %518 = vmatpush1.msra.mxu0 0.0
    %519 = vmatprep.mubr.f32.mxu0 0.0
    %520 = vmatmul.mubr.f32.gmra.mrb[0].mxu0 %v453
    %v521 = vpop.f32.mrb[0].mxu0
    %v522 = vadd.f32 %v123, %v521
    %v523 = vpop.f32.mrb[0].mxu0
    %524 = vdwg.mxu0
    %v525 = vmul.f32 %v522, %v131
    %v526 = vtanh.pop %v525
    %v527 = vmul.f32 %v526, %v131
    %v528 = vadd.f32 %v527, %v132
    %v529 = vmul.f32 %v528, %v443
    %531 = vrot.lane.b32.xlu0 %v528, 96
    %v532 = vpop.permute.xlu0 %531
    %v534 = vmul.f32 %v528, %v532
    %536 = vrot.lane.b32.xlu0 %v534, 16
    %v537 = vpop.permute.xlu0 %536
    %v539 = vadd.f32 %v529, %v537
    %v540 = vtanh.pop %v539
    %542 = vrot.lane.b32.xlu0 %v540, 32
    %v543 = vpop.permute.xlu0 %542
    %v545 = vmul.f32 %v528, %v543
    %547 = vrot.lane.b32.xlu0 %v545, 80
    %v548 = vpop.permute.xlu0 %547
    %v550 = vrot.slane %v123, 2
    %v552 = vsel %vm160, %v548, 0
    %554 = vmatprep.subr.mxu0 0.0
    %555 = vmatpush1.msra.mxu0 %v28
    %556 = vmatprep.subr.mxu0 0.0
    %557 = vmatpush1.msra.mxu0 %v29
    %558 = vmatprep.subr.mxu0 0.0
    %559 = vmatpush1.msra.mxu0 0.0
    %560 = vmatprep.subr.mxu0 0.0
    %561 = vmatpush1.msra.mxu0 0.0
    %562 = vmatprep.subr.mxu0 0.0
    %563 = vmatpush1.msra.mxu0 0.0
    %564 = vmatprep.subr.mxu0 0.0
    %565 = vmatpush1.msra.mxu0 0.0
    %566 = vmatprep.subr.mxu0 0.0
    %567 = vmatpush1.msra.mxu0 0.0
    %568 = vmatprep.subr.mxu0 0.0
    %569 = vmatpush1.msra.mxu0 0.0
    %570 = vmatprep.subr.mxu0 0.0
    %571 = vmatpush1.msra.mxu0 0.0
    %572 = vmatprep.subr.mxu0 0.0
    %573 = vmatpush1.msra.mxu0 0.0
    %574 = vmatprep.subr.mxu0 0.0
    %575 = vmatpush1.msra.mxu0 0.0
    %576 = vmatprep.subr.mxu0 0.0
    %577 = vmatpush1.msra.mxu0 0.0
    %578 = vmatprep.subr.mxu0 0.0
    %579 = vmatpush1.msra.mxu0 0.0
    %580 = vmatprep.subr.mxu0 0.0
    %581 = vmatpush1.msra.mxu0 0.0
    %582 = vmatprep.subr.mxu0 0.0
    %583 = vmatpush1.msra.mxu0 0.0
    %584 = vmatprep.subr.mxu0 0.0
    %585 = vmatpush1.msra.mxu0 0.0
    %586 = vmatprep.subr.mxu0 0.0
    %587 = vmatpush1.msra.mxu0 0.0
    %588 = vmatprep.subr.mxu0 0.0
    %589 = vmatpush1.msra.mxu0 0.0
    %590 = vmatprep.subr.mxu0 0.0
    %591 = vmatpush1.msra.mxu0 0.0
    %592 = vmatprep.subr.mxu0 0.0
    %593 = vmatpush1.msra.mxu0 0.0
    %594 = vmatprep.subr.mxu0 0.0
    %595 = vmatpush1.msra.mxu0 0.0
    %596 = vmatprep.subr.mxu0 0.0
    %597 = vmatpush1.msra.mxu0 0.0
    %598 = vmatprep.subr.mxu0 0.0
    %599 = vmatpush1.msra.mxu0 0.0
    %600 = vmatprep.subr.mxu0 0.0
    %601 = vmatpush1.msra.mxu0 0.0
    %602 = vmatprep.subr.mxu0 0.0
    %603 = vmatpush1.msra.mxu0 0.0
    %604 = vmatprep.subr.mxu0 0.0
    %605 = vmatpush1.msra.mxu0 0.0
    %606 = vmatprep.subr.mxu0 0.0
    %607 = vmatpush1.msra.mxu0 0.0
    %608 = vmatprep.subr.mxu0 0.0
    %609 = vmatpush1.msra.mxu0 0.0
    %610 = vmatprep.subr.mxu0 0.0
    %611 = vmatpush1.msra.mxu0 0.0
    %612 = vmatprep.subr.mxu0 0.0
    %613 = vmatpush1.msra.mxu0 0.0
    %614 = vmatprep.subr.mxu0 0.0
    %615 = vmatpush1.msra.mxu0 0.0
    %616 = vmatprep.subr.mxu0 0.0
    %617 = vmatpush1.msra.mxu0 0.0
    %618 = vmatprep.mubr.f32.mxu0 0.0
    %619 = vmatmul.mubr.f32.gmra.mrb[0].mxu0 %v552
    %v620 = vpop.f32.mrb[0].mxu0
    %v621 = vadd.f32 %v550, %v620
    %v622 = vpop.f32.mrb[0].mxu0
    %623 = vdwg.mxu0
    %v624 = vmul.f32 %v621, %v131
    %v625 = vtanh.pop %v624
    %v626 = vmul.f32 %v625, %v131
    %v627 = vadd.f32 %v626, %v132
    %v628 = vmul.f32 %v627, %v539
    %630 = vrot.lane.b32.xlu0 %v627, 96
    %v631 = vpop.permute.xlu0 %630
    %v633 = vmul.f32 %v627, %v631
    %635 = vrot.lane.b32.xlu0 %v633, 16
    %v636 = vpop.permute.xlu0 %635
    %v638 = vadd.f32 %v628, %v636
    %v639 = vtanh.pop %v638
    %641 = vrot.lane.b32.xlu0 %v639, 32
    %v642 = vpop.permute.xlu0 %641
    %v644 = vmul.f32 %v627, %v642
    %646 = vrot.lane.b32.xlu0 %v644, 80
    %v647 = vpop.permute.xlu0 %646
    %v648 = vrot.slane %v123, 4
    %v650 = vsel %vm160, %v647, 0
    %652 = vmatprep.subr.mxu0 0.0
    %653 = vmatpush1.msra.mxu0 %v28
    %654 = vmatprep.subr.mxu0 0.0
    %655 = vmatpush1.msra.mxu0 %v29
    %656 = vmatprep.subr.mxu0 0.0
    %657 = vmatpush1.msra.mxu0 0.0
    %658 = vmatprep.subr.mxu0 0.0
    %659 = vmatpush1.msra.mxu0 0.0
    %660 = vmatprep.subr.mxu0 0.0
    %661 = vmatpush1.msra.mxu0 0.0
    %662 = vmatprep.subr.mxu0 0.0
    %663 = vmatpush1.msra.mxu0 0.0
    %664 = vmatprep.subr.mxu0 0.0
    %665 = vmatpush1.msra.mxu0 0.0
    %666 = vmatprep.subr.mxu0 0.0
    %667 = vmatpush1.msra.mxu0 0.0
    %668 = vmatprep.subr.mxu0 0.0
    %669 = vmatpush1.msra.mxu0 0.0
    %670 = vmatprep.subr.mxu0 0.0
    %671 = vmatpush1.msra.mxu0 0.0
    %672 = vmatprep.subr.mxu0 0.0
    %673 = vmatpush1.msra.mxu0 0.0
    %674 = vmatprep.subr.mxu0 0.0
    %675 = vmatpush1.msra.mxu0 0.0
    %676 = vmatprep.subr.mxu0 0.0
    %677 = vmatpush1.msra.mxu0 0.0
    %678 = vmatprep.subr.mxu0 0.0
    %679 = vmatpush1.msra.mxu0 0.0
    %680 = vmatprep.subr.mxu0 0.0
    %681 = vmatpush1.msra.mxu0 0.0
    %682 = vmatprep.subr.mxu0 0.0
    %683 = vmatpush1.msra.mxu0 0.0
    %684 = vmatprep.subr.mxu0 0.0
    %685 = vmatpush1.msra.mxu0 0.0
    %686 = vmatprep.subr.mxu0 0.0
    %687 = vmatpush1.msra.mxu0 0.0
    %688 = vmatprep.subr.mxu0 0.0
    %689 = vmatpush1.msra.mxu0 0.0
    %690 = vmatprep.subr.mxu0 0.0
    %691 = vmatpush1.msra.mxu0 0.0
    %692 = vmatprep.subr.mxu0 0.0
    %693 = vmatpush1.msra.mxu0 0.0
    %694 = vmatprep.subr.mxu0 0.0
    %695 = vmatpush1.msra.mxu0 0.0
    %696 = vmatprep.subr.mxu0 0.0
    %697 = vmatpush1.msra.mxu0 0.0
    %698 = vmatprep.subr.mxu0 0.0
    %699 = vmatpush1.msra.mxu0 0.0
    %700 = vmatprep.subr.mxu0 0.0
    %701 = vmatpush1.msra.mxu0 0.0
    %702 = vmatprep.subr.mxu0 0.0
    %703 = vmatpush1.msra.mxu0 0.0
    %704 = vmatprep.subr.mxu0 0.0
    %705 = vmatpush1.msra.mxu0 0.0
    %706 = vmatprep.subr.mxu0 0.0
    %707 = vmatpush1.msra.mxu0 0.0
    %708 = vmatprep.subr.mxu0 0.0
    %709 = vmatpush1.msra.mxu0 0.0
    %710 = vmatprep.subr.mxu0 0.0
    %711 = vmatpush1.msra.mxu0 0.0
    %712 = vmatprep.subr.mxu0 0.0
    %713 = vmatpush1.msra.mxu0 0.0
    %714 = vmatprep.subr.mxu0 0.0
    %715 = vmatpush1.msra.mxu0 0.0
    %716 = vmatprep.mubr.f32.mxu0 0.0
    %717 = vmatmul.mubr.f32.gmra.mrb[0].mxu0 %v650
    %v718 = vpop.f32.mrb[0].mxu0
    %v719 = vadd.f32 %v648, %v718
    %v720 = vpop.f32.mrb[0].mxu0
    %721 = vdwg.mxu0
    %v722 = vmul.f32 %v719, %v131
    %v723 = vtanh.pop %v722
    %v724 = vmul.f32 %v723, %v131
    %v725 = vadd.f32 %v724, %v132
    %v726 = vmul.f32 %v725, %v638
    %728 = vrot.lane.b32.xlu0 %v725, 96
    %v729 = vpop.permute.xlu0 %728
    %v731 = vmul.f32 %v725, %v729
    %733 = vrot.lane.b32.xlu0 %v731, 16
    %v734 = vpop.permute.xlu0 %733
    %v736 = vadd.f32 %v726, %v734
    %v737 = vtanh.pop %v736
    %739 = vrot.lane.b32.xlu0 %v737, 32
    %v740 = vpop.permute.xlu0 %739
    %v742 = vmul.f32 %v725, %v740
    %744 = vrot.lane.b32.xlu0 %v742, 80
    %v745 = vpop.permute.xlu0 %744
    %v746 = vrot.slane %v123, 6
    %v748 = vsel %vm160, %v745, 0
    %750 = vmatprep.subr.mxu0 0.0
    %751 = vmatpush1.msra.mxu0 %v28
    %752 = vmatprep.subr.mxu0 0.0
    %753 = vmatpush1.msra.mxu0 %v29
    %754 = vmatprep.subr.mxu0 0.0
    %755 = vmatpush1.msra.mxu0 0.0
    %756 = vmatprep.subr.mxu0 0.0
    %757 = vmatpush1.msra.mxu0 0.0
    %758 = vmatprep.subr.mxu0 0.0
    %759 = vmatpush1.msra.mxu0 0.0
    %760 = vmatprep.subr.mxu0 0.0
    %761 = vmatpush1.msra.mxu0 0.0
    %762 = vmatprep.subr.mxu0 0.0
    %763 = vmatpush1.msra.mxu0 0.0
    %764 = vmatprep.subr.mxu0 0.0
    %765 = vmatpush1.msra.mxu0 0.0
    %766 = vmatprep.subr.mxu0 0.0
    %767 = vmatpush1.msra.mxu0 0.0
    %768 = vmatprep.subr.mxu0 0.0
    %769 = vmatpush1.msra.mxu0 0.0
    %770 = vmatprep.subr.mxu0 0.0
    %771 = vmatpush1.msra.mxu0 0.0
    %772 = vmatprep.subr.mxu0 0.0
    %773 = vmatpush1.msra.mxu0 0.0
    %774 = vmatprep.subr.mxu0 0.0
    %775 = vmatpush1.msra.mxu0 0.0
    %776 = vmatprep.subr.mxu0 0.0
    %777 = vmatpush1.msra.mxu0 0.0
    %778 = vmatprep.subr.mxu0 0.0
    %779 = vmatpush1.msra.mxu0 0.0
    %780 = vmatprep.subr.mxu0 0.0
    %781 = vmatpush1.msra.mxu0 0.0
    %782 = vmatprep.subr.mxu0 0.0
    %783 = vmatpush1.msra.mxu0 0.0
    %784 = vmatprep.subr.mxu0 0.0
    %785 = vmatpush1.msra.mxu0 0.0
    %786 = vmatprep.subr.mxu0 0.0
    %787 = vmatpush1.msra.mxu0 0.0
    %788 = vmatprep.subr.mxu0 0.0
    %789 = vmatpush1.msra.mxu0 0.0
    %790 = vmatprep.subr.mxu0 0.0
    %791 = vmatpush1.msra.mxu0 0.0
    %792 = vmatprep.subr.mxu0 0.0
    %793 = vmatpush1.msra.mxu0 0.0
    %794 = vmatprep.subr.mxu0 0.0
    %795 = vmatpush1.msra.mxu0 0.0
    %796 = vmatprep.subr.mxu0 0.0
    %797 = vmatpush1.msra.mxu0 0.0
    %798 = vmatprep.subr.mxu0 0.0
    %799 = vmatpush1.msra.mxu0 0.0
    %800 = vmatprep.subr.mxu0 0.0
    %801 = vmatpush1.msra.mxu0 0.0
    %802 = vmatprep.subr.mxu0 0.0
    %803 = vmatpush1.msra.mxu0 0.0
    %804 = vmatprep.subr.mxu0 0.0
    %805 = vmatpush1.msra.mxu0 0.0
    %806 = vmatprep.subr.mxu0 0.0
    %807 = vmatpush1.msra.mxu0 0.0
    %808 = vmatprep.subr.mxu0 0.0
    %809 = vmatpush1.msra.mxu0 0.0
    %810 = vmatprep.subr.mxu0 0.0
    %811 = vmatpush1.msra.mxu0 0.0
    %812 = vmatprep.subr.mxu0 0.0
    %813 = vmatpush1.msra.mxu0 0.0
    %814 = vmatprep.mubr.f32.mxu0 0.0
    %815 = vmatmul.mubr.f32.gmra.mrb[0].mxu0 %v748
    %v816 = vpop.f32.mrb[0].mxu0
    %v817 = vadd.f32 %v746, %v816
    %v818 = vpop.f32.mrb[0].mxu0
    %819 = vdwg.mxu0
    %v820 = vmul.f32 %v817, %v131
    %v821 = vtanh.pop %v820
    %v822 = vmul.f32 %v821, %v131
    %v823 = vadd.f32 %v822, %v132
    %v824 = vmul.f32 %v823, %v736
    %826 = vrot.lane.b32.xlu0 %v823, 96
    %v827 = vpop.permute.xlu0 %826
    %v829 = vmul.f32 %v823, %v827
    %831 = vrot.lane.b32.xlu0 %v829, 16
    %v832 = vpop.permute.xlu0 %831
    %v834 = vadd.f32 %v824, %v832
    %v835 = vtanh.pop %v834
    %837 = vrot.lane.b32.xlu0 %v835, 32
    %v838 = vpop.permute.xlu0 %837
    %v840 = vmul.f32 %v823, %v838
    %v841 = vlaneseq
    %v842 = vshrl.u32 %v841, 7
    %v843 = vsub.s32 0, %v842
    %v844 = vrot.slane %v33, %v843
    %846 = vrot.lane.b32.xlu0 %v840, 80
    %v847 = vpop.permute.xlu0 %846
    %v848 = vsel %vm160, %v847, 0
    %850 = vmatprep.subr.mxu0 0.0
    %851 = vmatpush1.msra.mxu0 %v31
    %852 = vmatprep.subr.mxu0 0.0
    %853 = vmatpush1.msra.mxu0 %v32
    %854 = vmatprep.subr.mxu0 0.0
    %855 = vmatpush1.msra.mxu0 0.0
    %856 = vmatprep.subr.mxu0 0.0
    %857 = vmatpush1.msra.mxu0 0.0
    %858 = vmatprep.subr.mxu0 0.0
    %859 = vmatpush1.msra.mxu0 0.0
    %860 = vmatprep.subr.mxu0 0.0
    %861 = vmatpush1.msra.mxu0 0.0
    %862 = vmatprep.subr.mxu0 0.0
    %863 = vmatpush1.msra.mxu0 0.0
    %864 = vmatprep.subr.mxu0 0.0
    %865 = vmatpush1.msra.mxu0 0.0
    %866 = vmatprep.subr.mxu0 0.0
    %867 = vmatpush1.msra.mxu0 0.0
    %868 = vmatprep.subr.mxu0 0.0
    %869 = vmatpush1.msra.mxu0 0.0
    %870 = vmatprep.subr.mxu0 0.0
    %871 = vmatpush1.msra.mxu0 0.0
    %872 = vmatprep.subr.mxu0 0.0
    %873 = vmatpush1.msra.mxu0 0.0
    %874 = vmatprep.subr.mxu0 0.0
    %875 = vmatpush1.msra.mxu0 0.0
    %876 = vmatprep.subr.mxu0 0.0
    %877 = vmatpush1.msra.mxu0 0.0
    %878 = vmatprep.subr.mxu0 0.0
    %879 = vmatpush1.msra.mxu0 0.0
    %880 = vmatprep.subr.mxu0 0.0
    %881 = vmatpush1.msra.mxu0 0.0
    %882 = vmatprep.subr.mxu0 0.0
    %883 = vmatpush1.msra.mxu0 0.0
    %884 = vmatprep.subr.mxu0 0.0
    %885 = vmatpush1.msra.mxu0 0.0
    %886 = vmatprep.subr.mxu0 0.0
    %887 = vmatpush1.msra.mxu0 0.0
    %888 = vmatprep.subr.mxu0 0.0
    %889 = vmatpush1.msra.mxu0 0.0
    %890 = vmatprep.subr.mxu0 0.0
    %891 = vmatpush1.msra.mxu0 0.0
    %892 = vmatprep.subr.mxu0 0.0
    %893 = vmatpush1.msra.mxu0 0.0
    %894 = vmatprep.subr.mxu0 0.0
    %895 = vmatpush1.msra.mxu0 0.0
    %896 = vmatprep.subr.mxu0 0.0
    %897 = vmatpush1.msra.mxu0 0.0
    %898 = vmatprep.subr.mxu0 0.0
    %899 = vmatpush1.msra.mxu0 0.0
    %900 = vmatprep.subr.mxu0 0.0
    %901 = vmatpush1.msra.mxu0 0.0
    %902 = vmatprep.subr.mxu0 0.0
    %903 = vmatpush1.msra.mxu0 0.0
    %904 = vmatprep.subr.mxu0 0.0
    %905 = vmatpush1.msra.mxu0 0.0
    %906 = vmatprep.subr.mxu0 0.0
    %907 = vmatpush1.msra.mxu0 0.0
    %908 = vmatprep.subr.mxu0 0.0
    %909 = vmatpush1.msra.mxu0 0.0
    %910 = vmatprep.subr.mxu0 0.0
    %911 = vmatpush1.msra.mxu0 0.0
    %912 = vmatprep.subr.mxu0 0.0
    %913 = vmatpush1.msra.mxu0 0.0
    %914 = vmatprep.mubr.f32.mxu0 0.0
    %915 = vmatmul.mubr.f32.gmra.mrb[0].mxu0 %v848
    %v916 = vpop.f32.mrb[0].mxu0
    %v917 = vadd.f32 %v844, %v916
    %v918 = vpop.f32.mrb[0].mxu0
    %919 = vdwg.mxu0
    %vm920 = vcmask 74752
    %921 = vst.msk [vmem:[#allocation5] sm:$0x3] %vm920, %v917
    // Predicated region
    $region14: #{lstm_model_forward.1} parent=1 // pred_check
      _
    $region15: #{lstm_model_forward.1} parent=1 // pred_check_branch
      %923 = sbr.rel (0) target = $region17
    $region16: #{lstm_model_forward.1} parent=1 // pred_region
      %s925 = ssub.s32 32, 32
      %926 = vsyncadd [#allocation4], %s925
      %s928 = sshll.u32 [#allocation5], 4
      %s929 = int_to_ptr.vmem [resolvable:$true] %s928
      %931 = dma.vmem_to_hbm [thread:$0]  %s929, 32, %s2, [#allocation4]
    $region17: #{lstm_model_forward.1} parent=1 // pred_fallthru
      _
    // Predicated region
    $region18: #{lstm_model_forward.1} parent=1 // pred_check
      _
    $region19: #{lstm_model_forward.1} parent=1 // pred_check_branch
      %933 = sbr.rel (0) target = $region21
    $region20: #{lstm_model_forward.1} parent=1 // pred_region
      %934 = dma.done [#allocation4], 32
    $region21: #{lstm_model_forward.1} parent=1 // pred_fallthru
      _
    %935 = vsyncpa [#allocation3], 1
    %936 = vsyncpa [#allocation4], 1

</llo_original>
